<compile_context>
chip_gen: v6e
topology: v6e:2x2x1
jax: 0.10.0
libtpu: 0.0.40
codegen_flags: <defaults>
</compile_context>

<pallas_src>
import functools

import jax
import jax.numpy as jnp
from jax.experimental import pallas as pl
from jax.experimental.pallas import tpu as pltpu


def _round_up(x: int, m: int) -> int:
    return (x + m - 1) // m * m


# -----------------------------------------------------------------------------
# Kernel: fused im2col-matmul conv + per-tile partial BN statistics.
# -----------------------------------------------------------------------------
def _conv_stats_kernel(p_ref, w_ref, y_ref, stats_ref):
    # p_ref     : (TM, KKC_pad)        im2col patches for this row tile (bf16)
    # w_ref     : (KKC_pad, Cout_pad)  reshaped conv weight (shared, bf16)
    # y_ref     : (TM, Cout_pad)       conv output tile (bf16 store)
    # stats_ref : (1, 2, Cout_pad)     per-tile [sum, sum_of_squares] (f32)
    acc = jnp.dot(p_ref[...], w_ref[...], preferred_element_type=jnp.float32)
    y_ref[...] = acc.astype(y_ref.dtype)
    # Stats come from the f32 accumulator (not the bf16 store) -> exact batch
    # statistics up to f32 accumulation.
    s1 = jnp.sum(acc, axis=0, keepdims=True)        # (1, Cout_pad)
    s2 = jnp.sum(acc * acc, axis=0, keepdims=True)  # (1, Cout_pad)
    # Single full-block store (avoids two masked sub-slice stores).
    stats_ref[...] = jnp.concatenate([s1, s2], axis=0)[None]


@functools.partial(
    jax.jit,
    static_argnames=("stride", "eps", "block_rows", "compute_dtype", "y_dtype"))
def conv_bn(x_nchw, weight_oihw, gamma, beta, *, stride=1, eps=1e-3,
            block_rows=512, compute_dtype=jnp.bfloat16, y_dtype=jnp.bfloat16):
    """PyTorch-equivalent ConvBN forward (conv bias=False, BN with batch stats).

    x_nchw      : [N, Cin, H, W]
    weight_oihw : [Cout, Cin, K, K]
    gamma, beta : [Cout]
    returns     : [N, Cout, Ho, Wo]
    """
    N, Cin, H, W = x_nchw.shape
    Cout, _, K, _ = weight_oihw.shape
    pad = (K - 1) // 2  # TODO(synk): matches PyTorch padding only for odd kSize.
    Ho = (H + 2 * pad - K) // stride + 1
    Wo = (W + 2 * pad - K) // stride + 1

    rows = N * Ho * Wo
    kkc = K * K * Cin
    # Contraction dim: 8-aligned.  (128-alignment only pays once compute-bound;
    # for memory-bound shapes it just inflates patch traffic.)
    kkc_pad = _round_up(kkc, 8)
    # Output-channel (lane) dim: lane-dense 128-padding only when Cout is large.
    # For small Cout, padding to 128 would amplify y HBM bytes by 128/Cout on a
    # memory-bound kernel; masked stores on a Cout-wide output are cheaper.
    cout_pad = Cout if Cout < 128 else _round_up(Cout, 128)

    # Row tiling: big tiles (amortize per-step overhead), but keep >= 2 roughly
    # even tiles so the "parallel" axis can use both TensorCores on v7x.
    rows8 = _round_up(rows, 8)
    tm = min(block_rows, rows8)
    if rows8 // tm < 2 and rows8 >= 16:
        tm = _round_up(rows8 // 2, 8)
    rows_pad = _round_up(rows, tm)
    n_tiles = rows_pad // tm

    # ---- wrapper-side layout plumbing: NCHW->NHWC, spatial pad, im2col, bf16.
    x_nhwc = jnp.transpose(x_nchw, (0, 2, 3, 1)).astype(compute_dtype)
    x_sp = jnp.pad(x_nhwc, ((0, 0), (pad, pad), (pad, pad), (0, 0)))
    taps = []
    for kh in range(K):
        for kw in range(K):
            taps.append(x_sp[:, kh:kh + stride * Ho:stride,
                             kw:kw + stride * Wo:stride, :])
    patches = jnp.concatenate(taps, axis=-1).reshape(rows, kkc)
    patches = jnp.pad(patches, ((0, rows_pad - rows), (0, kkc_pad - kkc)))

    w2 = jnp.transpose(weight_oihw, (2, 3, 1, 0)).reshape(kkc, Cout)
    w2 = jnp.pad(w2, ((0, kkc_pad - kkc), (0, cout_pad - Cout)))
    w2 = w2.astype(compute_dtype)

    cbytes = jnp.dtype(compute_dtype).itemsize
    ybytes = jnp.dtype(y_dtype).itemsize
    w_slab_bytes = kkc_pad * cout_pad * cbytes

    # Grid-invariant weight slab: double-buffering it is pure VMEM waste (bites
    # on v7x's 64 MiB/TC).  Single-buffer it once it is big enough to matter.
    if w_slab_bytes >= (2 << 20):
        w_spec = pl.BlockSpec((kkc_pad, cout_pad), lambda i: (0, 0),
                              pipeline_mode=pl.Buffered(1))
        w_bufs = 1
    else:
        w_spec = pl.BlockSpec((kkc_pad, cout_pad), lambda i: (0, 0))
        w_bufs = 2

    est_vmem = (2 * tm * kkc_pad * cbytes        # patches, double-buffered
                + w_bufs * w_slab_bytes          # weight slab
                + 2 * tm * cout_pad * ybytes     # y, double-buffered
                + 2 * 2 * cout_pad * 4)          # stats, double-buffered
    # Headroom x2, clamped so it is safe on v7x (64 MiB/TC physical).
    vmem_limit = int(min(56 << 20, max(32 << 20, 2 * est_vmem)))

    cparams = pltpu.CompilerParams(dimension_semantics=("parallel",),
                                   vmem_limit_bytes=vmem_limit)
    cost = pl.CostEstimate(
        flops=2 * rows_pad * kkc_pad * cout_pad,
        transcendentals=0,
        bytes_accessed=(rows_pad * kkc_pad * cbytes + w_slab_bytes
                        + rows_pad * cout_pad * ybytes
                        + n_tiles * 2 * cout_pad * 4))

    # ---- single Pallas pass: conv (one MXU contraction per tile) + stats.
    y, stats = pl.pallas_call(
        _conv_stats_kernel,
        grid=(n_tiles,),
        in_specs=[
            pl.BlockSpec((tm, kkc_pad), lambda i: (i, 0)),
            w_spec,
        ],
        out_specs=(
            pl.BlockSpec((tm, cout_pad), lambda i: (i, 0)),
            pl.BlockSpec((1, 2, cout_pad), lambda i: (i, 0, 0)),
        ),
        out_shape=(
            jax.ShapeDtypeStruct((rows_pad, cout_pad), y_dtype),
            jax.ShapeDtypeStruct((n_tiles, 2, cout_pad), jnp.float32),
        ),
        compiler_params=cparams,
        cost_estimate=cost,
    )(patches, w2)

    # ---- tiny cross-tile reduction + per-channel scale/shift (f32).
    # Padded rows/channels contribute exactly zero to both sums, so dividing by
    # the true row count keeps the batch statistics exact.
    sums = jnp.sum(stats[:, 0, :Cout], axis=0)
    sumsq = jnp.sum(stats[:, 1, :Cout], axis=0)
    n_elems = jnp.float32(rows)
    mean = sums / n_elems
    # E[y^2]-E[y]^2 in f32; clamp guards tiny negative residue.
    # TODO(synk): use a shifted/two-pass variance if |mean| >> std on real data.
    var = jnp.maximum(sumsq / n_elems - mean * mean, 0.0)
    inv = jax.lax.rsqrt(var + eps)
    scale = gamma.astype(jnp.float32) * inv             # (Cout,)
    shift = beta.astype(jnp.float32) - mean * scale     # (Cout,)

    # ---- BN affine fused by XLA with the crop + NHWC->NCHW transpose
    #      (no second Pallas pass / no extra y write+read round-trip).
    out = y[:rows, :Cout].astype(jnp.float32) * scale + shift
    out = out.reshape(N, Ho, Wo, Cout).astype(x_nchw.dtype)
    return jnp.transpose(out, (0, 3, 1, 2))


def _reference(x_nchw, weight_oihw, gamma, beta, stride, eps):
    """Pure-JAX f32 reference (lax.conv + batch-stat BN), PyTorch semantics."""
    Cout, _, K, _ = weight_oihw.shape
    pad = (K - 1) // 2
    x_nhwc = jnp.transpose(x_nchw, (0, 2, 3, 1))
    w_hwio = jnp.transpose(weight_oihw, (2, 3, 1, 0))
    y = jax.lax.conv_general_dilated(
        x_nhwc, w_hwio, window_strides=(stride, stride),
        padding=[(pad, pad), (pad, pad)],
        dimension_numbers=("NHWC", "HWIO", "NHWC"))
    mean = jnp.mean(y, axis=(0, 1, 2), keepdims=True)
    var = jnp.mean((y - mean) ** 2, axis=(0, 1, 2), keepdims=True)  # biased
    y = (y - mean) / jnp.sqrt(var + eps) * gamma + beta
    return jnp.transpose(y, (0, 3, 1, 2))


if __name__ == "__main__":
    # ConvBN(nIn=4, nOut=8, kSize=3, stride=1)  -- module spec uses eps=0.001.
    N, Cin, H, W = 2, 4, 16, 16
    Cout, K, eps = 8, 3, 1e-3

    key = jax.random.PRNGKey(0)
    kx, kw = jax.random.split(key)
    x = jax.random.normal(kx, (N, Cin, H, W), dtype=jnp.float32)
    weight = jax.random.normal(kw, (Cout, Cin, K, K), dtype=jnp.float32)
    weight = weight * (1.0 / jnp.sqrt(Cin * K * K))
    gamma = jnp.ones((Cout,), dtype=jnp.float32)   # BatchNorm2d default affine
    beta = jnp.zeros((Cout,), dtype=jnp.float32)

    # stride=1 (same-size) and stride=2 (down-sampling) paths.
    for stride in (1, 2):
        out = conv_bn(x, weight, gamma, beta, stride=stride, eps=eps)
        out = jax.block_until_ready(out)
        ref = _reference(x, weight, gamma, beta, stride, eps)
        Ho = (H + 2 * ((K - 1) // 2) - K) // stride + 1
        Wo = (W + 2 * ((K - 1) // 2) - K) // stride + 1
        assert out.shape == (N, Cout, Ho, Wo), out.shape
        # bf16 operands + bf16 intermediate y -> looser tolerance vs f32 ref.
        err = float(jnp.max(jnp.abs(out - ref)))
        assert jnp.allclose(out, ref, atol=5e-2, rtol=5e-2), err

    print("KERNEL_OK")
</pallas_src>

<mosaic_0001>
module attributes {stable_mosaic.version = 11 : i64} {
  func.func @_conv_stats_kernel(%arg0: i32, %arg1: memref<256x40xbf16, #tpu.memory_space<vmem>>, %arg2: memref<40x8xbf16, #tpu.memory_space<vmem>>, %arg3: memref<256x8xbf16, #tpu.memory_space<vmem>>, %arg4: memref<1x2x8xf32, #tpu.memory_space<vmem>>) attributes {dimension_semantics = [#tpu.dimension_semantics<parallel>], iteration_bounds = array<i64: 2>, scalar_prefetch = 0 : i64, scratch_operands = 0 : i64, tpu.core_type = #tpu.core_type<tc>, window_params = [{transform_indices = @transform_0, window_bounds = array<i64: 256, 40>}, {pipeline_mode = #tpu.pipeline_mode<synchronous>, transform_indices = @transform_1, window_bounds = array<i64: 40, 8>}, {transform_indices = @transform_2, window_bounds = array<i64: 256, 8>}, {transform_indices = @transform_3, window_bounds = array<i64: 1, 2, 8>}]} {
    %c0 = arith.constant 0 : index
    %c0_0 = arith.constant 0 : index
    %0 = vector.load %arg1[%c0, %c0_0] : memref<256x40xbf16, #tpu.memory_space<vmem>>, vector<256x40xbf16>
    %c0_1 = arith.constant 0 : index
    %c0_2 = arith.constant 0 : index
    %1 = vector.load %arg2[%c0_1, %c0_2] : memref<40x8xbf16, #tpu.memory_space<vmem>>, vector<40x8xbf16>
    %cst = arith.constant dense<0.000000e+00> : vector<256x8xf32>
    %2 = tpu.matmul %0, %1, %cst {dimension_numbers = #tpu.dot_dimension_numbers<[1], [0], [0], [1], [0, 0, 1, 1], [], []>} : vector<256x40xbf16>, vector<40x8xbf16>, vector<256x8xf32> -> vector<256x8xf32>
    %3 = arith.truncf %2 : vector<256x8xf32> to vector<256x8xbf16>
    %c0_3 = arith.constant 0 : index
    %c0_4 = arith.constant 0 : index
    %4 = vector.load %arg3[%c0_3, %c0_4] : memref<256x8xbf16, #tpu.memory_space<vmem>>, vector<256x8xbf16>
    tpu.vector_store %arg3[%c0_3, %c0_4], %3 {strides = array<i32>} : memref<256x8xbf16, #tpu.memory_space<vmem>>, vector<256x8xbf16>,
    %cst_5 = arith.constant dense<0.000000e+00> : vector<8xf32>
    %5 = vector.multi_reduction <add>, %2, %cst_5 [0] : vector<256x8xf32> to vector<8xf32>
    %6 = vector.shape_cast %5 : vector<8xf32> to vector<1x8xf32>
    %7 = arith.mulf %2, %2 : vector<256x8xf32>
    %cst_6 = arith.constant dense<0.000000e+00> : vector<8xf32>
    %8 = vector.multi_reduction <add>, %7, %cst_6 [0] : vector<256x8xf32> to vector<8xf32>
    %9 = vector.shape_cast %8 : vector<8xf32> to vector<1x8xf32>
    %10 = tpu.concatenate %6, %9 in 0 : vector<1x8xf32>, vector<1x8xf32> -> vector<2x8xf32>
    %11 = vector.shape_cast %10 : vector<2x8xf32> to vector<1x2x8xf32>
    %c0_7 = arith.constant 0 : index
    %c0_8 = arith.constant 0 : index
    %c0_9 = arith.constant 0 : index
    %12 = vector.load %arg4[%c0_7, %c0_8, %c0_9] : memref<1x2x8xf32, #tpu.memory_space<vmem>>, vector<1x2x8xf32>
    tpu.vector_store %arg4[%c0_7, %c0_8, %c0_9], %11 {strides = array<i32>} : memref<1x2x8xf32, #tpu.memory_space<vmem>>, vector<1x2x8xf32>,
    return
  }
  func.func @transform_0(%arg0: i32) -> (i32, i32) {
    %c0_i32 = arith.constant 0 : i32
    %c0_i32_0 = arith.constant 0 : i32
    return %arg0, %c0_i32 : i32, i32
  }
  func.func @transform_1(%arg0: i32) -> (i32, i32) {
    %c0_i32 = arith.constant 0 : i32
    %c0_i32_0 = arith.constant 0 : i32
    %c0_i32_1 = arith.constant 0 : i32
    return %c0_i32, %c0_i32_0 : i32, i32
  }
  func.func @transform_2(%arg0: i32) -> (i32, i32) {
    %c0_i32 = arith.constant 0 : i32
    %c0_i32_0 = arith.constant 0 : i32
    return %arg0, %c0_i32 : i32, i32
  }
  func.func @transform_3(%arg0: i32) -> (i32, i32, i32) {
    %c0_i32 = arith.constant 0 : i32
    %c0_i32_0 = arith.constant 0 : i32
    %c0_i32_1 = arith.constant 0 : i32
    return %arg0, %c0_i32, %c0_i32_0 : i32, i32, i32
  }
}

</mosaic_0001>

<llo_original>
// kernel: conv_bn.1
$region0: #{conv_bn.1}
  #allocation0 [shape = 'u32[]', space=smem, size = 0x4, offset = 0x4, fixed_abs, tag = 'smem constant byte address 0x4 - core index']
  #allocation1 [shape = 'u32[144,128]{1,0:T(1,128)}', space=vmem, size = 0x12000, scoped, tag = 'internal scratch']
  %s0 = inlined_call_operand.vmem [shape: bf16[512,40], index: 0, kind: input, shape index: {}]
  %s1 = inlined_call_operand.vmem [shape: bf16[40,8], index: 1, kind: input, shape index: {}]
  %s2 = inlined_call_operand.vmem [shape: bf16[512,8], index: 2, kind: output, shape index: {0}]
  %s3 = inlined_call_operand.vmem [shape: f32[2,2,8], index: 3, kind: output, shape index: {1}]
  %4 = xla_tuple %s2, %s3
  %s5 = sld [smem:[#allocation0]]
  $region49: #{conv_bn.1} parent=0
    _
  %s7 = ssub.s32 1, %s5
  %s8 = scalar_select 0, %s7, %s5
  loop: start=0, step=1, limit=4
  $region2: #{conv_bn.1} parent=0 // loop_pre_header
    _
  $region3: #{conv_bn.1} parent=0 // loop_header
    %s10 = sphi 0, %s14
    %p11 = scmp.ge.s32.totalorder %s10, 4
    %s20 = sphi 0, %s22
    %s23 = sphi 0, %s20
    %s24 = sphi 0, %s23
    %s40 = sphi 0, %s24
    %s44 = sphi 0, %s44
    %s46 = sphi 0, %s44
    %s47 = sphi 0, %s46
    %s61 = sphi 0, %s47
    %s67 = sphi 0, %s69
    %s70 = sphi 0, %s67
    %s71 = sphi 0, %s70
    %s87 = sphi 0, %s71
    %s93 = sphi 0, %s95
    %s96 = sphi 0, %s93
    %s97 = sphi 0, %s96
    %s113 = sphi 0, %s97
  $region4: #{conv_bn.1} parent=0 // loop_header_branch
    %13 = sbr.rel (%p11) target = $region8
  $region5: #{conv_bn.1} parent=0 // loop_body
    %s15 = ssub.s32 %s10, 1
    %s16 = ssub.s32 %s10, 2
    %s17 = sadd.s32 %s10, 1
    %s18 = ssub.s32 %s10, %s17
    %p19 = scmp.eq.s32.totalorder %s18, 0
    %s21 = sadd.s32 %s20, 1
    %s22 = scalar_select %p19, %s20, %s21
    %p25 = pneg %p19
    %p26 = scmp.eq.s32.totalorder %s10, 1
    %p27 = por %p25, %p26
    %p28 = scmp.ne.s32.totalorder %s20, %s23
    %p29 = scmp.eq.s32.totalorder %s10, 0
    %p30 = por %p28, %p29
    %p31 = scmp.ne.s32.totalorder %s20, %s23
    %p32 = scmp.eq.s32.totalorder %s15, 1
    %p33 = por %p31, %p32
    %p34 = scmp.ne.s32.totalorder %s23, %s24
    %p35 = scmp.eq.s32.totalorder %s15, 0
    %p36 = por %p34, %p35
    %p37 = scmp.ne.s32.totalorder %s23, %s24
    %p38 = scmp.eq.s32.totalorder %s16, 1
    %p39 = por %p37, %p38
    %p41 = scmp.ne.s32.totalorder %s24, %s40
    %p42 = scmp.eq.s32.totalorder %s16, 0
    %p43 = por %p41, %p42
    %s45 = sadd.s32 %s44, 1
    %p48 = scmp.eq.s32.totalorder %s10, 1
    %p49 = scmp.ne.s32.totalorder %s44, %s46
    %p50 = scmp.eq.s32.totalorder %s10, 0
    %p51 = por %p49, %p50
    %p52 = scmp.ne.s32.totalorder %s44, %s46
    %p53 = scmp.eq.s32.totalorder %s15, 1
    %p54 = por %p52, %p53
    %p55 = scmp.ne.s32.totalorder %s46, %s47
    %p56 = scmp.eq.s32.totalorder %s15, 0
    %p57 = por %p55, %p56
    %p58 = scmp.ne.s32.totalorder %s46, %s47
    %p59 = scmp.eq.s32.totalorder %s16, 1
    %p60 = por %p58, %p59
    %p62 = scmp.ne.s32.totalorder %s47, %s61
    %p63 = scmp.eq.s32.totalorder %s16, 0
    %p64 = por %p62, %p63
    %s65 = ssub.s32 %s10, %s17
    %p66 = scmp.eq.s32.totalorder %s65, 0
    %s68 = sadd.s32 %s67, 1
    %s69 = scalar_select %p66, %s67, %s68
    %p72 = pneg %p66
    %p73 = scmp.eq.s32.totalorder %s10, 1
    %p74 = por %p72, %p73
    %p75 = scmp.ne.s32.totalorder %s67, %s70
    %p76 = scmp.eq.s32.totalorder %s10, 0
    %p77 = por %p75, %p76
    %p78 = scmp.ne.s32.totalorder %s67, %s70
    %p79 = scmp.eq.s32.totalorder %s15, 1
    %p80 = por %p78, %p79
    %p81 = scmp.ne.s32.totalorder %s70, %s71
    %p82 = scmp.eq.s32.totalorder %s15, 0
    %p83 = por %p81, %p82
    %p84 = scmp.ne.s32.totalorder %s70, %s71
    %p85 = scmp.eq.s32.totalorder %s16, 1
    %p86 = por %p84, %p85
    %p88 = scmp.ne.s32.totalorder %s71, %s87
    %p89 = scmp.eq.s32.totalorder %s16, 0
    %p90 = por %p88, %p89
    %s91 = ssub.s32 %s10, %s17
    %p92 = scmp.eq.s32.totalorder %s91, 0
    %s94 = sadd.s32 %s93, 1
    %s95 = scalar_select %p92, %s93, %s94
    %p98 = pneg %p92
    %p99 = scmp.eq.s32.totalorder %s10, 1
    %p100 = por %p98, %p99
    %p101 = scmp.ne.s32.totalorder %s93, %s96
    %p102 = scmp.eq.s32.totalorder %s10, 0
    %p103 = por %p101, %p102
    %p104 = scmp.ne.s32.totalorder %s93, %s96
    %p105 = scmp.eq.s32.totalorder %s15, 1
    %p106 = por %p104, %p105
    %p107 = scmp.ne.s32.totalorder %s96, %s97
    %p108 = scmp.eq.s32.totalorder %s15, 0
    %p109 = por %p107, %p108
    %p110 = scmp.ne.s32.totalorder %s96, %s97
    %p111 = scmp.eq.s32.totalorder %s16, 1
    %p112 = por %p110, %p111
    %p114 = scmp.ne.s32.totalorder %s97, %s113
    %p115 = scmp.eq.s32.totalorder %s16, 0
    %p116 = por %p114, %p115
    %p117 = scmp.le.s32.totalorder 1, %s10
    %p118 = scmp.lt.s32.totalorder %s10, 3
    %p119 = pnand %p117, %p118
    %p120 = pneg %p119
    // Predicated region
    $region9: #{conv_bn.1} parent=5 // pred_check
      _
    $region10: #{conv_bn.1} parent=5 // pred_check_branch
      %122 = sbr.rel (%p119) target = $region12
    $region11: #{conv_bn.1} parent=5 // pred_region
      %s123 = ssub.s32 %s10, 1
      // Predicated region
      $region13: #{conv_bn.1} parent=11 // pred_check
        %p124 = pneg %p57
      $region14: #{conv_bn.1} parent=11 // pred_check_branch
        %126 = sbr.rel (%p124) target = $region16
      $region15: #{conv_bn.1} parent=11 // pred_region
        _
      $region16: #{conv_bn.1} parent=11 // pred_fallthru
        _
    $region12: #{conv_bn.1} parent=5 // pred_fallthru
      _
    %p127 = scmp.lt.s32.totalorder %s10, 2
    // Predicated region
    $region17: #{conv_bn.1} parent=5 // pred_check
      %p128 = pneg %p127
    $region18: #{conv_bn.1} parent=5 // pred_check_branch
      %130 = sbr.rel (%p128) target = $region20
    $region19: #{conv_bn.1} parent=5 // pred_region
      // Predicated region
      $region21: #{conv_bn.1} parent=19 // pred_check
        %p131 = pneg %p30
      $region22: #{conv_bn.1} parent=19 // pred_check_branch
        %133 = sbr.rel (%p131) target = $region24
      $region23: #{conv_bn.1} parent=19 // pred_region
        %s134 = smul.u32 32, %s10
        %p135 = scmp.lt.s32.totalorder %s134, 63
        %s136 = scalar_select %p135, %s134, 63
        %s137 = smul.addr %s136, 4
        %s138 = scalar_lea.vmem %s0, %s137
        %s139 = smul.u32 32, %s10
      $region24: #{conv_bn.1} parent=19 // pred_fallthru
        _
    $region20: #{conv_bn.1} parent=5 // pred_fallthru
      _
    %p140 = scmp.le.s32.totalorder 1, %s10
    %p141 = scmp.lt.s32.totalorder %s10, 3
    %p142 = pnand %p140, %p141
    %p143 = pneg %p142
    // Predicated region
    $region25: #{conv_bn.1} parent=5 // pred_check
      _
    $region26: #{conv_bn.1} parent=5 // pred_check_branch
      %145 = sbr.rel (%p142) target = $region28
    $region27: #{conv_bn.1} parent=5 // pred_region
      %s146 = ssub.s32 %s10, 1
      %s147 = smul.u32 32, %s15
      %p148 = scmp.lt.s32.totalorder %s147, 63
      %s149 = scalar_select %p148, %s147, 63
      %s150 = smul.addr %s149, 4
      %s151 = scalar_lea.vmem %s0, %s150
      %p152 = pneg %p36
      %p153 = pneg %p33
      %p154 = pneg %p57
      %p155 = pneg %p54
      %p156 = pneg %p83
      %p157 = pneg %p80
      %s158 = smul.u32 32, %s15
      %p159 = scmp.lt.s32.totalorder %s158, 63
      %s160 = scalar_select %p159, %s158, 63
      %s161 = smul.addr %s160, 4
      %s162 = scalar_lea.vmem %s2, %s161
      %p163 = pneg %p109
      %p164 = pneg %p106
      %p165 = scmp.lt.s32.totalorder %s15, 1
      %s166 = scalar_select %p165, %s15, 1
      %s167 = smul.addr %s166, 2
      %s168 = scalar_lea.vmem %s3, %s167
      %s169 = smul.u32 32, %s15
      %p170 = scmp.lt.s32.totalorder %s169, 63
      %s171 = scalar_select %p170, %s169, 63
      %s172 = smul.addr %s171, 4
      %s173 = scalar_lea.vmem %s0, %s172
      %s174 = smul.u32 32, %s15
      %s175 = smul.u32 32, %s15
      %p176 = scmp.lt.s32.totalorder %s175, 63
      %s177 = scalar_select %p176, %s175, 63
      %s178 = smul.addr %s177, 4
      %s179 = scalar_lea.vmem %s2, %s178
      %s180 = smul.u32 32, %s15
      %p181 = scmp.lt.s32.totalorder %s15, 1
      %s182 = scalar_select %p181, %s15, 1
      %s183 = smul.addr %s182, 2
      %s184 = scalar_lea.vmem %s3, %s183
      %v186 = vld [vmem:[%s173] sm:$0xf]
      %v187 = vld [vmem:[%s173 + $0x4] sm:$0xf]
      %v188 = vld [vmem:[%s173 + $0x8] sm:$0xf]
      %v189 = vld [vmem:[%s173 + $0xc] sm:$0xf]
      %v190 = vld [vmem:[%s173 + $0x10] sm:$0xf]
      %v191 = vld [vmem:[%s173 + $0x14] sm:$0xf]
      %v192 = vld [vmem:[%s173 + $0x18] sm:$0xf]
      %v193 = vld [vmem:[%s173 + $0x1c] sm:$0xf]
      %v194 = vld [vmem:[%s173 + $0x20] sm:$0xf]
      %v195 = vld [vmem:[%s173 + $0x24] sm:$0xf]
      %v196 = vld [vmem:[%s173 + $0x28] sm:$0xf]
      %v197 = vld [vmem:[%s173 + $0x2c] sm:$0xf]
      %v198 = vld [vmem:[%s173 + $0x30] sm:$0xf]
      %v199 = vld [vmem:[%s173 + $0x34] sm:$0xf]
      %v200 = vld [vmem:[%s173 + $0x38] sm:$0xf]
      %v201 = vld [vmem:[%s173 + $0x3c] sm:$0xf]
      %v202 = vld [vmem:[%s173 + $0x40] sm:$0xf]
      %v203 = vld [vmem:[%s173 + $0x44] sm:$0xf]
      %v204 = vld [vmem:[%s173 + $0x48] sm:$0xf]
      %v205 = vld [vmem:[%s173 + $0x4c] sm:$0xf]
      %v206 = vld [vmem:[%s173 + $0x50] sm:$0xf]
      %v207 = vld [vmem:[%s173 + $0x54] sm:$0xf]
      %v208 = vld [vmem:[%s173 + $0x58] sm:$0xf]
      %v209 = vld [vmem:[%s173 + $0x5c] sm:$0xf]
      %v210 = vld [vmem:[%s173 + $0x60] sm:$0xf]
      %v211 = vld [vmem:[%s173 + $0x64] sm:$0xf]
      %v212 = vld [vmem:[%s173 + $0x68] sm:$0xf]
      %v213 = vld [vmem:[%s173 + $0x6c] sm:$0xf]
      %v214 = vld [vmem:[%s173 + $0x70] sm:$0xf]
      %v215 = vld [vmem:[%s173 + $0x74] sm:$0xf]
      %v216 = vld [vmem:[%s173 + $0x78] sm:$0xf]
      %v217 = vld [vmem:[%s173 + $0x7c] sm:$0xf]
      %v218 = vld [vmem:[%s1] sm:$0xf]
      %v219 = vld [vmem:[%s1 + $0x4] sm:$0xf]
      %v220 = vld [vmem:[%s1 + $0x8] sm:$0xf]
      %v221 = vld [vmem:[%s1 + $0xc] sm:$0xf]
      %v222 = vld [vmem:[%s1 + $0x10] sm:$0xf]
      %v255 = vunpack.c.l.b16 %v186
      %v256 = vunpack.c.l.b16 %v187
      %v257 = vunpack.c.l.b16 %v188
      %v258 = vunpack.c.l.b16 %v189
      %v259 = vunpack.c.l.b16 %v190
      %v260 = vunpack.c.l.b16 %v191
      %v261 = vunpack.c.l.b16 %v192
      %v262 = vunpack.c.l.b16 %v193
      %v263 = vunpack.c.l.b16 %v194
      %v264 = vunpack.c.l.b16 %v195
      %v265 = vunpack.c.l.b16 %v196
      %v266 = vunpack.c.l.b16 %v197
      %v267 = vunpack.c.l.b16 %v198
      %v268 = vunpack.c.l.b16 %v199
      %v269 = vunpack.c.l.b16 %v200
      %v270 = vunpack.c.l.b16 %v201
      %v271 = vunpack.c.l.b16 %v202
      %v272 = vunpack.c.l.b16 %v203
      %v273 = vunpack.c.l.b16 %v204
      %v274 = vunpack.c.l.b16 %v205
      %v275 = vunpack.c.l.b16 %v206
      %v276 = vunpack.c.l.b16 %v207
      %v277 = vunpack.c.l.b16 %v208
      %v278 = vunpack.c.l.b16 %v209
      %v279 = vunpack.c.l.b16 %v210
      %v280 = vunpack.c.l.b16 %v211
      %v281 = vunpack.c.l.b16 %v212
      %v282 = vunpack.c.l.b16 %v213
      %v283 = vunpack.c.l.b16 %v214
      %v284 = vunpack.c.l.b16 %v215
      %v285 = vunpack.c.l.b16 %v216
      %v286 = vunpack.c.l.b16 %v217
      %v287 = vpack.c.b16 %v256, %v255
      %v288 = vpack.c.b16 %v258, %v257
      %v289 = vpack.c.b16 %v260, %v259
      %v290 = vpack.c.b16 %v262, %v261
      %v291 = vpack.c.b16 %v264, %v263
      %v292 = vpack.c.b16 %v266, %v265
      %v293 = vpack.c.b16 %v268, %v267
      %v294 = vpack.c.b16 %v270, %v269
      %v295 = vpack.c.b16 %v272, %v271
      %v296 = vpack.c.b16 %v274, %v273
      %v297 = vpack.c.b16 %v276, %v275
      %v298 = vpack.c.b16 %v278, %v277
      %v299 = vpack.c.b16 %v280, %v279
      %v300 = vpack.c.b16 %v282, %v281
      %v301 = vpack.c.b16 %v284, %v283
      %v302 = vpack.c.b16 %v286, %v285
      %v308 = vunpack.c.l.b16 %v218
      %v309 = vunpack.c.l.b16 %v219
      %v310 = vunpack.c.l.b16 %v220
      %v311 = vunpack.c.l.b16 %v221
      %v312 = vunpack.c.l.b16 %v222
      %v313 = vpack.c.b16 %v309, %v308
      %v314 = vpack.c.b16 %v311, %v310
      %v315 = vpack.c.b16 %v312, %v312
      %vm318 = vcmask 326656
      %v320 = vsel %vm318, %v287, 0
      %v323 = vsel %vm318, %v288, 0
      %v326 = vsel %vm318, %v289, 0
      %v329 = vsel %vm318, %v290, 0
      %v332 = vsel %vm318, %v291, 0
      %v335 = vsel %vm318, %v292, 0
      %v338 = vsel %vm318, %v293, 0
      %v341 = vsel %vm318, %v294, 0
      %v344 = vsel %vm318, %v295, 0
      %v347 = vsel %vm318, %v296, 0
      %v350 = vsel %vm318, %v297, 0
      %v353 = vsel %vm318, %v298, 0
      %v356 = vsel %vm318, %v299, 0
      %v359 = vsel %vm318, %v300, 0
      %v362 = vsel %vm318, %v301, 0
      %v365 = vsel %vm318, %v302, 0
      %vm367 = vcmask 1043456
      %v369 = vsel %vm367, %v315, 0
      %371 = vmatprep.subr.bf16.mxu0 0
      %372 = vmatpush1.bf16.msra.mxu0 0
      %373 = vmatprep.subr.bf16.mxu0 0
      %374 = vmatpush1.bf16.msra.mxu0 0
      %375 = vmatprep.subr.bf16.mxu0 0
      %376 = vmatpush1.bf16.msra.mxu0 0
      %377 = vmatprep.subr.bf16.mxu0 0
      %378 = vmatpush1.bf16.msra.mxu0 0
      %379 = vmatprep.subr.bf16.mxu0 0
      %380 = vmatpush1.bf16.msra.mxu0 0
      %381 = vmatprep.subr.bf16.mxu0 0
      %382 = vmatpush1.bf16.msra.mxu0 %v369
      %383 = vmatprep.subr.bf16.mxu0 0
      %384 = vmatpush1.bf16.msra.mxu0 %v314
      %385 = vmatprep.subr.bf16.mxu0 0
      %386 = vmatpush1.bf16.msra.mxu0 %v313
      %387 = vmatprep.subr.bf16.mxu0 0
      %388 = vmatpush2.bf16.msra.mxu0 0
      %389 = vmatprep.subr.bf16.mxu0 0
      %390 = vmatpush2.bf16.msra.mxu0 0
      %391 = vmatprep.subr.bf16.mxu0 0
      %392 = vmatpush2.bf16.msra.mxu0 0
      %393 = vmatprep.subr.bf16.mxu0 0
      %394 = vmatpush2.bf16.msra.mxu0 0
      %395 = vmatprep.subr.bf16.mxu0 0
      %396 = vmatpush2.bf16.msra.mxu0 0
      %397 = vmatprep.subr.bf16.mxu0 0
      %398 = vmatpush2.bf16.msra.mxu0 0
      %399 = vmatprep.subr.bf16.mxu0 0
      %400 = vmatpush2.bf16.msra.mxu0 0
      %401 = vmatprep.subr.bf16.mxu0 0
      %402 = vmatpush2.bf16.msra.mxu0 0
      %403 = vmatprep.mubr.bf16.mxu0 0
      %404 = vmatmul.mubr.bf16.gmra.mxu0 %v320
      %v405 = vpop.f32.mrf.mxu0
      %v406 = vadd.f32 0.0, %v405
      %v407 = vpop.f32.mrf.mxu0
      %v408 = vpop.f32.mrf.mxu0
      %v409 = vadd.f32 0.0, %v408
      %v410 = vpop.f32.mrf.mxu0
      %411 = vmatprep.mubr.bf16.mxu0 0
      %412 = vmatmul.mubr.bf16.gmra.mxu0 %v323
      %v413 = vpop.f32.mrf.mxu0
      %v414 = vadd.f32 0.0, %v413
      %v415 = vpop.f32.mrf.mxu0
      %v416 = vpop.f32.mrf.mxu0
      %v417 = vadd.f32 0.0, %v416
      %v418 = vpop.f32.mrf.mxu0
      %419 = vmatprep.mubr.bf16.mxu0 0
      %420 = vmatmul.mubr.bf16.gmra.mxu0 %v326
      %v421 = vpop.f32.mrf.mxu0
      %v422 = vadd.f32 0.0, %v421
      %v423 = vpop.f32.mrf.mxu0
      %v424 = vpop.f32.mrf.mxu0
      %v425 = vadd.f32 0.0, %v424
      %v426 = vpop.f32.mrf.mxu0
      %427 = vmatprep.mubr.bf16.mxu0 0
      %428 = vmatmul.mubr.bf16.gmra.mxu0 %v329
      %v429 = vpop.f32.mrf.mxu0
      %v430 = vadd.f32 0.0, %v429
      %v431 = vpop.f32.mrf.mxu0
      %v432 = vpop.f32.mrf.mxu0
      %v433 = vadd.f32 0.0, %v432
      %v434 = vpop.f32.mrf.mxu0
      %435 = vmatprep.mubr.bf16.mxu0 0
      %436 = vmatmul.mubr.bf16.gmra.mxu0 %v332
      %v437 = vpop.f32.mrf.mxu0
      %v438 = vadd.f32 0.0, %v437
      %v439 = vpop.f32.mrf.mxu0
      %v440 = vpop.f32.mrf.mxu0
      %v441 = vadd.f32 0.0, %v440
      %v442 = vpop.f32.mrf.mxu0
      %443 = vmatprep.mubr.bf16.mxu0 0
      %444 = vmatmul.mubr.bf16.gmra.mxu0 %v335
      %v445 = vpop.f32.mrf.mxu0
      %v446 = vadd.f32 0.0, %v445
      %v447 = vpop.f32.mrf.mxu0
      %v448 = vpop.f32.mrf.mxu0
      %v449 = vadd.f32 0.0, %v448
      %v450 = vpop.f32.mrf.mxu0
      %451 = vmatprep.mubr.bf16.mxu0 0
      %452 = vmatmul.mubr.bf16.gmra.mxu0 %v338
      %v453 = vpop.f32.mrf.mxu0
      %v454 = vadd.f32 0.0, %v453
      %v455 = vpop.f32.mrf.mxu0
      %v456 = vpop.f32.mrf.mxu0
      %v457 = vadd.f32 0.0, %v456
      %v458 = vpop.f32.mrf.mxu0
      %459 = vmatprep.mubr.bf16.mxu0 0
      %460 = vmatmul.mubr.bf16.gmra.mxu0 %v341
      %v461 = vpop.f32.mrf.mxu0
      %v462 = vadd.f32 0.0, %v461
      %v463 = vpop.f32.mrf.mxu0
      %v464 = vpop.f32.mrf.mxu0
      %v465 = vadd.f32 0.0, %v464
      %v466 = vpop.f32.mrf.mxu0
      %467 = vmatprep.mubr.bf16.mxu0 0
      %468 = vmatmul.mubr.bf16.gmra.mxu0 %v344
      %v469 = vpop.f32.mrf.mxu0
      %v470 = vadd.f32 0.0, %v469
      %v471 = vpop.f32.mrf.mxu0
      %v472 = vpop.f32.mrf.mxu0
      %v473 = vadd.f32 0.0, %v472
      %v474 = vpop.f32.mrf.mxu0
      %475 = vmatprep.mubr.bf16.mxu0 0
      %476 = vmatmul.mubr.bf16.gmra.mxu0 %v347
      %v477 = vpop.f32.mrf.mxu0
      %v478 = vadd.f32 0.0, %v477
      %v479 = vpop.f32.mrf.mxu0
      %v480 = vpop.f32.mrf.mxu0
      %v481 = vadd.f32 0.0, %v480
      %v482 = vpop.f32.mrf.mxu0
      %483 = vmatprep.mubr.bf16.mxu0 0
      %484 = vmatmul.mubr.bf16.gmra.mxu0 %v350
      %v485 = vpop.f32.mrf.mxu0
      %v486 = vadd.f32 0.0, %v485
      %v487 = vpop.f32.mrf.mxu0
      %v488 = vpop.f32.mrf.mxu0
      %v489 = vadd.f32 0.0, %v488
      %v490 = vpop.f32.mrf.mxu0
      %491 = vmatprep.mubr.bf16.mxu0 0
      %492 = vmatmul.mubr.bf16.gmra.mxu0 %v353
      %v493 = vpop.f32.mrf.mxu0
      %v494 = vadd.f32 0.0, %v493
      %v495 = vpop.f32.mrf.mxu0
      %v496 = vpop.f32.mrf.mxu0
      %v497 = vadd.f32 0.0, %v496
      %v498 = vpop.f32.mrf.mxu0
      %499 = vmatprep.mubr.bf16.mxu0 0
      %500 = vmatmul.mubr.bf16.gmra.mxu0 %v356
      %v501 = vpop.f32.mrf.mxu0
      %v502 = vadd.f32 0.0, %v501
      %v503 = vpop.f32.mrf.mxu0
      %v504 = vpop.f32.mrf.mxu0
      %v505 = vadd.f32 0.0, %v504
      %v506 = vpop.f32.mrf.mxu0
      %507 = vmatprep.mubr.bf16.mxu0 0
      %508 = vmatmul.mubr.bf16.gmra.mxu0 %v359
      %v509 = vpop.f32.mrf.mxu0
      %v510 = vadd.f32 0.0, %v509
      %v511 = vpop.f32.mrf.mxu0
      %v512 = vpop.f32.mrf.mxu0
      %v513 = vadd.f32 0.0, %v512
      %v514 = vpop.f32.mrf.mxu0
      %515 = vmatprep.mubr.bf16.mxu0 0
      %516 = vmatmul.mubr.bf16.gmra.mxu0 %v362
      %v517 = vpop.f32.mrf.mxu0
      %v518 = vadd.f32 0.0, %v517
      %v519 = vpop.f32.mrf.mxu0
      %v520 = vpop.f32.mrf.mxu0
      %v521 = vadd.f32 0.0, %v520
      %v522 = vpop.f32.mrf.mxu0
      %523 = vmatprep.mubr.bf16.mxu0 0
      %524 = vmatmul.mubr.bf16.gmra.mxu0 %v365
      %v525 = vpop.f32.mrf.mxu0
      %v526 = vadd.f32 0.0, %v525
      %v527 = vpop.f32.mrf.mxu0
      %v528 = vpop.f32.mrf.mxu0
      %v529 = vadd.f32 0.0, %v528
      %v530 = vpop.f32.mrf.mxu0
      %531 = vdwg.mxu0
      %v532 = vpack.c.bf16 %v409, %v406
      %v533 = vpack.c.bf16 %v417, %v414
      %v534 = vpack.c.bf16 %v425, %v422
      %v535 = vpack.c.bf16 %v433, %v430
      %v536 = vpack.c.bf16 %v441, %v438
      %v537 = vpack.c.bf16 %v449, %v446
      %v538 = vpack.c.bf16 %v457, %v454
      %v539 = vpack.c.bf16 %v465, %v462
      %v540 = vpack.c.bf16 %v473, %v470
      %v541 = vpack.c.bf16 %v481, %v478
      %v542 = vpack.c.bf16 %v489, %v486
      %v543 = vpack.c.bf16 %v497, %v494
      %v544 = vpack.c.bf16 %v505, %v502
      %v545 = vpack.c.bf16 %v513, %v510
      %v546 = vpack.c.bf16 %v521, %v518
      %v547 = vpack.c.bf16 %v529, %v526
      %v564 = vunpack.c.l.b16 %v532
      %v565 = vunpack.c.h.b16 %v532
      %v566 = vunpack.c.l.b16 %v533
      %v567 = vunpack.c.h.b16 %v533
      %v568 = vunpack.c.l.b16 %v534
      %v569 = vunpack.c.h.b16 %v534
      %v570 = vunpack.c.l.b16 %v535
      %v571 = vunpack.c.h.b16 %v535
      %v572 = vunpack.c.l.b16 %v536
      %v573 = vunpack.c.h.b16 %v536
      %v574 = vunpack.c.l.b16 %v537
      %v575 = vunpack.c.h.b16 %v537
      %v576 = vunpack.c.l.b16 %v538
      %v577 = vunpack.c.h.b16 %v538
      %v578 = vunpack.c.l.b16 %v539
      %v579 = vunpack.c.h.b16 %v539
      %v580 = vunpack.c.l.b16 %v540
      %v581 = vunpack.c.h.b16 %v540
      %v582 = vunpack.c.l.b16 %v541
      %v583 = vunpack.c.h.b16 %v541
      %v584 = vunpack.c.l.b16 %v542
      %v585 = vunpack.c.h.b16 %v542
      %v586 = vunpack.c.l.b16 %v543
      %v587 = vunpack.c.h.b16 %v543
      %v588 = vunpack.c.l.b16 %v544
      %v589 = vunpack.c.h.b16 %v544
      %v590 = vunpack.c.l.b16 %v545
      %v591 = vunpack.c.h.b16 %v545
      %v592 = vunpack.c.l.b16 %v546
      %v593 = vunpack.c.h.b16 %v546
      %v594 = vunpack.c.l.b16 %v547
      %v595 = vunpack.c.h.b16 %v547
      %v596 = vpack.c.b16 %v564, %v564
      %v597 = vpack.c.b16 %v565, %v565
      %v598 = vpack.c.b16 %v566, %v566
      %v599 = vpack.c.b16 %v567, %v567
      %v600 = vpack.c.b16 %v568, %v568
      %v601 = vpack.c.b16 %v569, %v569
      %v602 = vpack.c.b16 %v570, %v570
      %v603 = vpack.c.b16 %v571, %v571
      %v604 = vpack.c.b16 %v572, %v572
      %v605 = vpack.c.b16 %v573, %v573
      %v606 = vpack.c.b16 %v574, %v574
      %v607 = vpack.c.b16 %v575, %v575
      %v608 = vpack.c.b16 %v576, %v576
      %v609 = vpack.c.b16 %v577, %v577
      %v610 = vpack.c.b16 %v578, %v578
      %v611 = vpack.c.b16 %v579, %v579
      %v612 = vpack.c.b16 %v580, %v580
      %v613 = vpack.c.b16 %v581, %v581
      %v614 = vpack.c.b16 %v582, %v582
      %v615 = vpack.c.b16 %v583, %v583
      %v616 = vpack.c.b16 %v584, %v584
      %v617 = vpack.c.b16 %v585, %v585
      %v618 = vpack.c.b16 %v586, %v586
      %v619 = vpack.c.b16 %v587, %v587
      %v620 = vpack.c.b16 %v588, %v588
      %v621 = vpack.c.b16 %v589, %v589
      %v622 = vpack.c.b16 %v590, %v590
      %v623 = vpack.c.b16 %v591, %v591
      %v624 = vpack.c.b16 %v592, %v592
      %v625 = vpack.c.b16 %v593, %v593
      %v626 = vpack.c.b16 %v594, %v594
      %v627 = vpack.c.b16 %v595, %v595
      %vm660 = vcmask 60416
      %661 = vst.msk [vmem:[%s179] sm:$0xf] %vm660, %v596
      %662 = vst.msk [vmem:[%s179 + $0x4] sm:$0xf] %vm660, %v597
      %663 = vst.msk [vmem:[%s179 + $0x8] sm:$0xf] %vm660, %v598
      %664 = vst.msk [vmem:[%s179 + $0xc] sm:$0xf] %vm660, %v599
      %665 = vst.msk [vmem:[%s179 + $0x10] sm:$0xf] %vm660, %v600
      %666 = vst.msk [vmem:[%s179 + $0x14] sm:$0xf] %vm660, %v601
      %667 = vst.msk [vmem:[%s179 + $0x18] sm:$0xf] %vm660, %v602
      %668 = vst.msk [vmem:[%s179 + $0x1c] sm:$0xf] %vm660, %v603
      %669 = vst.msk [vmem:[%s179 + $0x20] sm:$0xf] %vm660, %v604
      %670 = vst.msk [vmem:[%s179 + $0x24] sm:$0xf] %vm660, %v605
      %671 = vst.msk [vmem:[%s179 + $0x28] sm:$0xf] %vm660, %v606
      %672 = vst.msk [vmem:[%s179 + $0x2c] sm:$0xf] %vm660, %v607
      %673 = vst.msk [vmem:[%s179 + $0x30] sm:$0xf] %vm660, %v608
      %674 = vst.msk [vmem:[%s179 + $0x34] sm:$0xf] %vm660, %v609
      %675 = vst.msk [vmem:[%s179 + $0x38] sm:$0xf] %vm660, %v610
      %676 = vst.msk [vmem:[%s179 + $0x3c] sm:$0xf] %vm660, %v611
      %677 = vst.msk [vmem:[%s179 + $0x40] sm:$0xf] %vm660, %v612
      %678 = vst.msk [vmem:[%s179 + $0x44] sm:$0xf] %vm660, %v613
      %679 = vst.msk [vmem:[%s179 + $0x48] sm:$0xf] %vm660, %v614
      %680 = vst.msk [vmem:[%s179 + $0x4c] sm:$0xf] %vm660, %v615
      %681 = vst.msk [vmem:[%s179 + $0x50] sm:$0xf] %vm660, %v616
      %682 = vst.msk [vmem:[%s179 + $0x54] sm:$0xf] %vm660, %v617
      %683 = vst.msk [vmem:[%s179 + $0x58] sm:$0xf] %vm660, %v618
      %684 = vst.msk [vmem:[%s179 + $0x5c] sm:$0xf] %vm660, %v619
      %685 = vst.msk [vmem:[%s179 + $0x60] sm:$0xf] %vm660, %v620
      %686 = vst.msk [vmem:[%s179 + $0x64] sm:$0xf] %vm660, %v621
      %687 = vst.msk [vmem:[%s179 + $0x68] sm:$0xf] %vm660, %v622
      %688 = vst.msk [vmem:[%s179 + $0x6c] sm:$0xf] %vm660, %v623
      %689 = vst.msk [vmem:[%s179 + $0x70] sm:$0xf] %vm660, %v624
      %690 = vst.msk [vmem:[%s179 + $0x74] sm:$0xf] %vm660, %v625
      %691 = vst.msk [vmem:[%s179 + $0x78] sm:$0xf] %vm660, %v626
      %692 = vst.msk [vmem:[%s179 + $0x7c] sm:$0xf] %vm660, %v627
      %vm693 = vcmask 64512
      %v694 = vsel %vm693, %v406, 0.0
      %v695 = vsel %vm693, %v409, 0.0
      %v696 = vadd.f32 %v694, %v695
      %v697 = vsel %vm693, %v414, 0.0
      %v698 = vadd.f32 %v696, %v697
      %v699 = vsel %vm693, %v417, 0.0
      %v700 = vadd.f32 %v698, %v699
      %v701 = vsel %vm693, %v422, 0.0
      %v702 = vadd.f32 %v700, %v701
      %v703 = vsel %vm693, %v425, 0.0
      %v704 = vadd.f32 %v702, %v703
      %v705 = vsel %vm693, %v430, 0.0
      %v706 = vadd.f32 %v704, %v705
      %v707 = vsel %vm693, %v433, 0.0
      %v708 = vadd.f32 %v706, %v707
      %v709 = vsel %vm693, %v438, 0.0
      %v710 = vadd.f32 %v708, %v709
      %v711 = vsel %vm693, %v441, 0.0
      %v712 = vadd.f32 %v710, %v711
      %v713 = vsel %vm693, %v446, 0.0
      %v714 = vadd.f32 %v712, %v713
      %v715 = vsel %vm693, %v449, 0.0
      %v716 = vadd.f32 %v714, %v715
      %v717 = vsel %vm693, %v454, 0.0
      %v718 = vadd.f32 %v716, %v717
      %v719 = vsel %vm693, %v457, 0.0
      %v720 = vadd.f32 %v718, %v719
      %v721 = vsel %vm693, %v462, 0.0
      %v722 = vadd.f32 %v720, %v721
      %v723 = vsel %vm693, %v465, 0.0
      %v724 = vadd.f32 %v722, %v723
      %v725 = vsel %vm693, %v470, 0.0
      %v726 = vadd.f32 %v724, %v725
      %v727 = vsel %vm693, %v473, 0.0
      %v728 = vadd.f32 %v726, %v727
      %v729 = vsel %vm693, %v478, 0.0
      %v730 = vadd.f32 %v728, %v729
      %v731 = vsel %vm693, %v481, 0.0
      %v732 = vadd.f32 %v730, %v731
      %v733 = vsel %vm693, %v486, 0.0
      %v734 = vadd.f32 %v732, %v733
      %v735 = vsel %vm693, %v489, 0.0
      %v736 = vadd.f32 %v734, %v735
      %v737 = vsel %vm693, %v494, 0.0
      %v738 = vadd.f32 %v736, %v737
      %v739 = vsel %vm693, %v497, 0.0
      %v740 = vadd.f32 %v738, %v739
      %v741 = vsel %vm693, %v502, 0.0
      %v742 = vadd.f32 %v740, %v741
      %v743 = vsel %vm693, %v505, 0.0
      %v744 = vadd.f32 %v742, %v743
      %v745 = vsel %vm693, %v510, 0.0
      %v746 = vadd.f32 %v744, %v745
      %v747 = vsel %vm693, %v513, 0.0
      %v748 = vadd.f32 %v746, %v747
      %v749 = vsel %vm693, %v518, 0.0
      %v750 = vadd.f32 %v748, %v749
      %v751 = vsel %vm693, %v521, 0.0
      %v752 = vadd.f32 %v750, %v751
      %v753 = vsel %vm693, %v526, 0.0
      %v754 = vadd.f32 %v752, %v753
      %v755 = vsel %vm693, %v529, 0.0
      %v756 = vadd.f32 %v754, %v755
      %v757 = vrot.slane %v756, 4
      %v758 = vadd.f32 %v756, %v757
      %v759 = vrot.slane %v758, 2
      %v760 = vadd.f32 %v758, %v759
      %v761 = vrot.slane %v760, 1
      %v762 = vadd.f32 %v760, %v761
      %v763 = vmul.f32 %v406, %v406
      %v764 = vmul.f32 %v409, %v409
      %v765 = vmul.f32 %v414, %v414
      %v766 = vmul.f32 %v417, %v417
      %v767 = vmul.f32 %v422, %v422
      %v768 = vmul.f32 %v425, %v425
      %v769 = vmul.f32 %v430, %v430
      %v770 = vmul.f32 %v433, %v433
      %v771 = vmul.f32 %v438, %v438
      %v772 = vmul.f32 %v441, %v441
      %v773 = vmul.f32 %v446, %v446
      %v774 = vmul.f32 %v449, %v449
      %v775 = vmul.f32 %v454, %v454
      %v776 = vmul.f32 %v457, %v457
      %v777 = vmul.f32 %v462, %v462
      %v778 = vmul.f32 %v465, %v465
      %v779 = vmul.f32 %v470, %v470
      %v780 = vmul.f32 %v473, %v473
      %v781 = vmul.f32 %v478, %v478
      %v782 = vmul.f32 %v481, %v481
      %v783 = vmul.f32 %v486, %v486
      %v784 = vmul.f32 %v489, %v489
      %v785 = vmul.f32 %v494, %v494
      %v786 = vmul.f32 %v497, %v497
      %v787 = vmul.f32 %v502, %v502
      %v788 = vmul.f32 %v505, %v505
      %v789 = vmul.f32 %v510, %v510
      %v790 = vmul.f32 %v513, %v513
      %v791 = vmul.f32 %v518, %v518
      %v792 = vmul.f32 %v521, %v521
      %v793 = vmul.f32 %v526, %v526
      %v794 = vmul.f32 %v529, %v529
      %v795 = vsel %vm693, %v763, 0.0
      %v796 = vsel %vm693, %v764, 0.0
      %v797 = vadd.f32 %v795, %v796
      %v798 = vsel %vm693, %v765, 0.0
      %v799 = vadd.f32 %v797, %v798
      %v800 = vsel %vm693, %v766, 0.0
      %v801 = vadd.f32 %v799, %v800
      %v802 = vsel %vm693, %v767, 0.0
      %v803 = vadd.f32 %v801, %v802
      %v804 = vsel %vm693, %v768, 0.0
      %v805 = vadd.f32 %v803, %v804
      %v806 = vsel %vm693, %v769, 0.0
      %v807 = vadd.f32 %v805, %v806
      %v808 = vsel %vm693, %v770, 0.0
      %v809 = vadd.f32 %v807, %v808
      %v810 = vsel %vm693, %v771, 0.0
      %v811 = vadd.f32 %v809, %v810
      %v812 = vsel %vm693, %v772, 0.0
      %v813 = vadd.f32 %v811, %v812
      %v814 = vsel %vm693, %v773, 0.0
      %v815 = vadd.f32 %v813, %v814
      %v816 = vsel %vm693, %v774, 0.0
      %v817 = vadd.f32 %v815, %v816
      %v818 = vsel %vm693, %v775, 0.0
      %v819 = vadd.f32 %v817, %v818
      %v820 = vsel %vm693, %v776, 0.0
      %v821 = vadd.f32 %v819, %v820
      %v822 = vsel %vm693, %v777, 0.0
      %v823 = vadd.f32 %v821, %v822
      %v824 = vsel %vm693, %v778, 0.0
      %v825 = vadd.f32 %v823, %v824
      %v826 = vsel %vm693, %v779, 0.0
      %v827 = vadd.f32 %v825, %v826
      %v828 = vsel %vm693, %v780, 0.0
      %v829 = vadd.f32 %v827, %v828
      %v830 = vsel %vm693, %v781, 0.0
      %v831 = vadd.f32 %v829, %v830
      %v832 = vsel %vm693, %v782, 0.0
      %v833 = vadd.f32 %v831, %v832
      %v834 = vsel %vm693, %v783, 0.0
      %v835 = vadd.f32 %v833, %v834
      %v836 = vsel %vm693, %v784, 0.0
      %v837 = vadd.f32 %v835, %v836
      %v838 = vsel %vm693, %v785, 0.0
      %v839 = vadd.f32 %v837, %v838
      %v840 = vsel %vm693, %v786, 0.0
      %v841 = vadd.f32 %v839, %v840
      %v842 = vsel %vm693, %v787, 0.0
      %v843 = vadd.f32 %v841, %v842
      %v844 = vsel %vm693, %v788, 0.0
      %v845 = vadd.f32 %v843, %v844
      %v846 = vsel %vm693, %v789, 0.0
      %v847 = vadd.f32 %v845, %v846
      %v848 = vsel %vm693, %v790, 0.0
      %v849 = vadd.f32 %v847, %v848
      %v850 = vsel %vm693, %v791, 0.0
      %v851 = vadd.f32 %v849, %v850
      %v852 = vsel %vm693, %v792, 0.0
      %v853 = vadd.f32 %v851, %v852
      %v854 = vsel %vm693, %v793, 0.0
      %v855 = vadd.f32 %v853, %v854
      %v856 = vsel %vm693, %v794, 0.0
      %v857 = vadd.f32 %v855, %v856
      %v858 = vrot.slane %v857, 4
      %v859 = vadd.f32 %v857, %v858
      %v860 = vrot.slane %v859, 2
      %v861 = vadd.f32 %v859, %v860
      %v862 = vrot.slane %v861, 1
      %v863 = vadd.f32 %v861, %v862
      %vm864 = vcmask 1040384
      %v865 = vsel %vm864, %v762, %v863
      %vm866 = vcmask 58368
      %867 = vst.msk [vmem:[%s184] sm:$0x3] %vm866, %v865
      %s868 = smul.u32 32, %s15
      %p869 = scmp.lt.s32.totalorder %s868, 63
      %s870 = scalar_select %p869, %s868, 63
      %s871 = smul.addr %s870, 4
      %s872 = scalar_lea.vmem %s2, %s871
      %p873 = scmp.lt.s32.totalorder %s15, 1
      %s874 = scalar_select %p873, %s15, 1
      %s875 = smul.addr %s874, 2
      %s876 = scalar_lea.vmem %s3, %s875
      // Predicated region
      $region29: #{conv_bn.1} parent=27 // pred_check
        %p877 = pneg %p80
      $region30: #{conv_bn.1} parent=27 // pred_check_branch
        %879 = sbr.rel (%p877) target = $region32
      $region31: #{conv_bn.1} parent=27 // pred_region
        %s880 = smul.u32 32, %s15
      $region32: #{conv_bn.1} parent=27 // pred_fallthru
        _
      // Predicated region
      $region33: #{conv_bn.1} parent=27 // pred_check
        %p881 = pneg %p106
      $region34: #{conv_bn.1} parent=27 // pred_check_branch
        %883 = sbr.rel (%p881) target = $region36
      $region35: #{conv_bn.1} parent=27 // pred_region
        _
      $region36: #{conv_bn.1} parent=27 // pred_fallthru
        _
    $region28: #{conv_bn.1} parent=5 // pred_fallthru
      _
    %p884 = scmp.le.s32.totalorder 2, %s10
    // Predicated region
    $region37: #{conv_bn.1} parent=5 // pred_check
      %p885 = pneg %p884
    $region38: #{conv_bn.1} parent=5 // pred_check_branch
      %887 = sbr.rel (%p885) target = $region40
    $region39: #{conv_bn.1} parent=5 // pred_region
      %s888 = ssub.s32 %s10, 2
      // Predicated region
      $region41: #{conv_bn.1} parent=39 // pred_check
        %p889 = pneg %p86
      $region42: #{conv_bn.1} parent=39 // pred_check_branch
        %891 = sbr.rel (%p889) target = $region44
      $region43: #{conv_bn.1} parent=39 // pred_region
        %s892 = smul.u32 32, %s16
        %p893 = scmp.lt.s32.totalorder %s892, 63
        %s894 = scalar_select %p893, %s892, 63
        %s895 = smul.addr %s894, 4
        %s896 = scalar_lea.vmem %s2, %s895
      $region44: #{conv_bn.1} parent=39 // pred_fallthru
        _
      // Predicated region
      $region45: #{conv_bn.1} parent=39 // pred_check
        %p897 = pneg %p112
      $region46: #{conv_bn.1} parent=39 // pred_check_branch
        %899 = sbr.rel (%p897) target = $region48
      $region47: #{conv_bn.1} parent=39 // pred_region
        %p900 = scmp.lt.s32.totalorder %s16, 1
        %s901 = scalar_select %p900, %s16, 1
        %s902 = smul.addr %s901, 2
        %s903 = scalar_lea.vmem %s3, %s902
      $region48: #{conv_bn.1} parent=39 // pred_fallthru
        _
    $region40: #{conv_bn.1} parent=5 // pred_fallthru
      _
  $region6: #{conv_bn.1} parent=0 // loop_footer
    %s14 = sadd.s32 1, %s10
  $region7: #{conv_bn.1} parent=0 // loop_footer_branch
    %9 = sbr.rel target = $region3
  $region8: #{conv_bn.1} parent=0 // loop_exit
    _

</llo_original>
